<compile_context>
chip_gen: v7x
topology: tpu7x:2x2x1
jax: 0.10.0
libtpu: 0.0.40
codegen_flags: <defaults>
</compile_context>

<pallas_src>
import functools

import jax
import jax.numpy as jnp
from jax import lax
from jax.experimental import pallas as pl
from jax.experimental.pallas import tpu as pltpu


# ----------------------------------------------------------------------------
# Architecture definitions (mirror Critic.v1 .. Critic.v5 layer widths).
# ----------------------------------------------------------------------------
_VERSIONS = {
    1: [1, 64, 64, 1],
    2: [1, 64, 64, 64, 1],
    3: [1, 64, 64, 128, 128, 64, 64, 1],
    4: [1, 64, 128, 128, 64, 1],
    5: [1, 128, 128, 128, 128, 128, 128, 1],
}


def _round_up(n, m):
    return ((n + m - 1) // m) * m


# ----------------------------------------------------------------------------
# Kernel: full MLP for one batch tile, processed `chunk` lane-columns at a
# time.  Per-chunk fusion keeps live activations tiny and lets the MXU start
# chunk c+1's matmuls while the VPU finishes bias+ReLU of chunk c.
# Ref order: x_ref, (w0, b0, w1, b1, ...), out_ref
# ----------------------------------------------------------------------------
def _make_mlp_kernel(n_layers, chunk, n_chunks):
    def kernel(*refs):
        x_ref = refs[0]
        out_ref = refs[-1]
        p = refs[1:-1]

        def chunk_body(c, carry):
            col = pl.multiple_of(c * chunk, chunk)
            x = x_ref[:, pl.ds(col, chunk)]                        # (1, chunk)

            # ---- layer 0: in_features == 1 -> VPU broadcast FMA (no MXU) ----
            w0 = p[0][...].astype(jnp.float32)                     # (h0, 1)
            b0 = p[1][...].astype(jnp.float32)                     # (h0, 1)
            h = jnp.maximum(w0 * x + b0, 0.0)                      # (h0, chunk)

            # ---- hidden layers: MXU matmuls, lane-dense activations ----
            for i in range(1, n_layers - 1):
                w = p[2 * i][...]                                  # (out, in)
                b = p[2 * i + 1][...].astype(jnp.float32)          # (out, 1)
                h = jnp.dot(w, h.astype(w.dtype),
                            preferred_element_type=jnp.float32) + b
                h = jnp.maximum(h, 0.0)

            # ---- last layer: out_features == 1 -> VPU mult + sublane reduce ----
            wl = p[2 * (n_layers - 1)][...].astype(jnp.float32)       # (in, 1)
            bl = p[2 * (n_layers - 1) + 1][...].astype(jnp.float32)   # (1, 1)
            out = jnp.sum(wl * h, axis=0, keepdims=True) + bl         # (1, chunk)
            out_ref[:, pl.ds(col, chunk)] = out.astype(out_ref.dtype)
            return carry

        lax.fori_loop(0, n_chunks, chunk_body, 0, unroll=True)

    return kernel


# ----------------------------------------------------------------------------
# Parameter init (PyTorch-native: W (out, in), b (out,)) and ONE-TIME padding /
# relayout into the kernel's transposed layout.  Call prepare_critic_params
# once and reuse the result (perf review: keep this out of the hot path).
# ----------------------------------------------------------------------------
def init_critic_params(version, key):
    """PyTorch-style uniform init U(-1/sqrt(fan_in), +1/sqrt(fan_in))."""
    widths = _VERSIONS.get(version, _VERSIONS[1])
    params = []
    for in_f, out_f in zip(widths[:-1], widths[1:]):
        key, kw, kb = jax.random.split(key, 3)
        bound = 1.0 / (in_f ** 0.5)
        w = jax.random.uniform(kw, (out_f, in_f), jnp.float32, -bound, bound)
        b = jax.random.uniform(kb, (out_f,), jnp.float32, -bound, bound)
        params.append((w, b))
    return params


def prepare_critic_params(params, dtype=jnp.float32):
    """Pad hidden widths to a multiple of 8 (sublanes) and flip to kernel layout.

    Zero padding is numerically exact: padded channels are 0 before ReLU, stay
    0 after it, and meet zero weight rows/cols in the next layer.
    dtype=jnp.bfloat16 is an optional v5e speed/accuracy tradeoff.
    """
    n = len(params)
    flat = []
    for i, (w, b) in enumerate(params):
        out_f, in_f = w.shape
        if i == 0:
            out_p = _round_up(out_f, 8)
            wk = jnp.zeros((out_p, 1), dtype).at[:out_f, :].set(w.astype(dtype))
            bk = jnp.zeros((out_p, 1), dtype).at[:out_f, 0].set(b.astype(dtype))
        elif i == n - 1:
            # Final (1, in) row stored as a column (in_p, 1): VPU mult + reduce.
            in_p = _round_up(in_f, 8)
            wk = jnp.zeros((in_p, 1), dtype).at[:in_f, 0].set(w[0, :].astype(dtype))
            bk = b.reshape(1, 1).astype(dtype)
        else:
            out_p = _round_up(out_f, 8)
            in_p = _round_up(in_f, 8)
            wk = jnp.zeros((out_p, in_p), dtype).at[:out_f, :in_f].set(w.astype(dtype))
            bk = jnp.zeros((out_p, 1), dtype).at[:out_f, 0].set(b.astype(dtype))
        flat.extend([wk, bk])
    return tuple(flat)


# ----------------------------------------------------------------------------
# Wrapper.
# ----------------------------------------------------------------------------
@functools.partial(jax.jit, static_argnames=("batch_tile", "chunk"))
def critic_forward(x, flat_params, *, batch_tile=2048, chunk=512):
    """Run the Critic MLP with one Pallas kernel, tiled over the batch axis.

    x: (B, 1) float32 (PyTorch convention).  flat_params is the output of
    prepare_critic_params (prepared ONCE, outside this jitted call).
    batch_tile / chunk must be multiples of 128; B is zero-padded up to a tile
    multiple and the result sliced back, so any B works.
    """
    B, in_f = x.shape
    if in_f != 1:
        raise ValueError("Critic input feature dim must be 1")
    if batch_tile % 128 != 0 or chunk % 128 != 0:
        raise ValueError("batch_tile and chunk must be multiples of 128")

    flat = tuple(flat_params)
    n_layers = len(flat) // 2

    # Static tile sizing:
    #  * large tile amortizes per-grid-step overhead,
    #  * clamp so the 'parallel' batch grid keeps >= 2 steps when B allows
    #    (v7x: shards across both TensorCores),
    #  * tile is a whole number of in-kernel chunks.
    bt = max(128, min(batch_tile, _round_up(pl.cdiv(B, 2), 128)))
    ck = min(chunk, bt)
    bt = _round_up(bt, ck)
    B_pad = _round_up(B, bt)
    n_chunks = bt // ck

    # Transpose to (1, B) so batch sits on the lane axis; pad B to the tile.
    xt = jnp.zeros((1, B_pad), jnp.float32).at[0, :B].set(
        x[:, 0].astype(jnp.float32))

    kernel = _make_mlp_kernel(n_layers, ck, n_chunks)

    x_spec = pl.BlockSpec((1, bt), lambda i: (0, i))
    out_spec = pl.BlockSpec((1, bt), lambda i: (0, i))
    # Params: full-array blocks with a grid-invariant index_map -> Pallas
    # fetches them once and skips re-DMA on subsequent batch tiles.
    param_specs = [pl.BlockSpec(a.shape, lambda i: (0, 0)) for a in flat]

    out = pl.pallas_call(
        kernel,
        out_shape=jax.ShapeDtypeStruct((1, B_pad), jnp.float32),
        grid_spec=pltpu.PrefetchScalarGridSpec(
            num_scalar_prefetch=0,
            grid=(B_pad // bt,),
            in_specs=[x_spec] + param_specs,
            out_specs=out_spec,
        ),
        compiler_params=pltpu.CompilerParams(
            dimension_semantics=("parallel",),
        ),
    )(xt, *flat)

    return out[0, :B].reshape(B, 1)


def critic_forward_ref(x, params):
    """Pure-JAX reference (PyTorch-native weights: W (out, in), b (out,))."""
    h = x
    for i, (w, b) in enumerate(params):
        h = jnp.dot(h, w.T, precision=jax.lax.Precision.HIGHEST) + b
        if i < len(params) - 1:
            h = jnp.maximum(h, 0.0)
    return h


if __name__ == "__main__":
    key = jax.random.PRNGKey(0)
    k_x, k_p = jax.random.split(key)

    batch = 200                       # not a tile multiple: exercises pad+slice
    x = jax.random.normal(k_x, (batch, 1), jnp.float32)

    for version in (1, 2, 3, 4, 5):
        k_p, k_ver = jax.random.split(k_p)
        params = init_critic_params(version, k_ver)
        flat = prepare_critic_params(params)      # once, outside the jitted forward

        out = jax.block_until_ready(critic_forward(x, flat))
        ref = critic_forward_ref(x, params)

        assert out.shape == (batch, 1), (version, out.shape)
        err = float(jnp.max(jnp.abs(out - ref)))
        # Tolerance allows for differing MXU f32-emulation precision between
        # the in-kernel dot and the XLA reference matmuls.
        assert jnp.allclose(out, ref, atol=2e-2, rtol=2e-2), (version, err)

    # One slightly larger batch (still tiny) to exercise the multi-chunk
    # (n_chunks > 1) in-kernel loop path.
    xb = jax.random.normal(k_x, (1500, 1), jnp.float32)
    params = init_critic_params(3, jax.random.PRNGKey(3))
    flat = prepare_critic_params(params)
    outb = jax.block_until_ready(critic_forward(xb, flat))
    refb = critic_forward_ref(xb, params)
    assert outb.shape == (1500, 1)
    assert jnp.allclose(outb, refb, atol=2e-2, rtol=2e-2), float(
        jnp.max(jnp.abs(outb - refb)))

    print("KERNEL_OK")
</pallas_src>

<mosaic_0001>
module attributes {stable_mosaic.version = 11 : i64} {
  func.func @kernel(%arg0: i32, %arg1: memref<1x128xf32, #tpu.memory_space<vmem>>, %arg2: memref<64x1xf32, #tpu.memory_space<vmem>>, %arg3: memref<64x1xf32, #tpu.memory_space<vmem>>, %arg4: memref<64x64xf32, #tpu.memory_space<vmem>>, %arg5: memref<64x1xf32, #tpu.memory_space<vmem>>, %arg6: memref<64x1xf32, #tpu.memory_space<vmem>>, %arg7: memref<1x1xf32, #tpu.memory_space<vmem>>, %arg8: memref<1x128xf32, #tpu.memory_space<vmem>>) attributes {dimension_semantics = [#tpu.dimension_semantics<parallel>], iteration_bounds = array<i64: 2>, scalar_prefetch = 0 : i64, scratch_operands = 0 : i64, tpu.core_type = #tpu.core_type<tc>, window_params = [{transform_indices = @transform_0, window_bounds = array<i64: 1, 128>}, {pipeline_mode = #tpu.pipeline_mode<synchronous>, transform_indices = @transform_1, window_bounds = array<i64: 64, 1>}, {pipeline_mode = #tpu.pipeline_mode<synchronous>, transform_indices = @transform_2, window_bounds = array<i64: 64, 1>}, {pipeline_mode = #tpu.pipeline_mode<synchronous>, transform_indices = @transform_3, window_bounds = array<i64: 64, 64>}, {pipeline_mode = #tpu.pipeline_mode<synchronous>, transform_indices = @transform_4, window_bounds = array<i64: 64, 1>}, {pipeline_mode = #tpu.pipeline_mode<synchronous>, transform_indices = @transform_5, window_bounds = array<i64: 64, 1>}, {pipeline_mode = #tpu.pipeline_mode<synchronous>, transform_indices = @transform_6, window_bounds = array<i64: 1, 1>}, {transform_indices = @transform_7, window_bounds = array<i64: 1, 128>}]} {
    %c0_i32 = arith.constant 0 : i32
    %c128_i32 = arith.constant 128 : i32
    %0 = arith.muli %c0_i32, %c128_i32 : i32
    %1 = tpu.assume_multiple %0, 128 : i32
    %c0 = arith.constant 0 : index
    %2 = arith.index_cast %1 : i32 to index
    %3 = vector.load %arg1[%c0, %2] : memref<1x128xf32, #tpu.memory_space<vmem>>, vector<1x128xf32>
    %c0_0 = arith.constant 0 : index
    %c0_1 = arith.constant 0 : index
    %4 = vector.load %arg2[%c0_0, %c0_1] : memref<64x1xf32, #tpu.memory_space<vmem>>, vector<64x1xf32>
    %c0_2 = arith.constant 0 : index
    %c0_3 = arith.constant 0 : index
    %5 = vector.load %arg3[%c0_2, %c0_3] : memref<64x1xf32, #tpu.memory_space<vmem>>, vector<64x1xf32>
    %6 = vector.broadcast %4 : vector<64x1xf32> to vector<64x128xf32>
    %7 = vector.broadcast %3 : vector<1x128xf32> to vector<64x128xf32>
    %8 = arith.mulf %6, %7 : vector<64x128xf32>
    %9 = vector.broadcast %5 : vector<64x1xf32> to vector<64x128xf32>
    %10 = arith.addf %8, %9 : vector<64x128xf32>
    %cst = arith.constant 0.000000e+00 : f32
    %11 = vector.broadcast %cst : f32 to vector<64x128xf32>
    %12 = arith.maximumf %10, %11 : vector<64x128xf32>
    %c0_4 = arith.constant 0 : index
    %c0_5 = arith.constant 0 : index
    %13 = vector.load %arg4[%c0_4, %c0_5] : memref<64x64xf32, #tpu.memory_space<vmem>>, vector<64x64xf32>
    %c0_6 = arith.constant 0 : index
    %c0_7 = arith.constant 0 : index
    %14 = vector.load %arg5[%c0_6, %c0_7] : memref<64x1xf32, #tpu.memory_space<vmem>>, vector<64x1xf32>
    %cst_8 = arith.constant dense<0.000000e+00> : vector<64x128xf32>
    %15 = tpu.matmul %13, %12, %cst_8 {dimension_numbers = #tpu.dot_dimension_numbers<[1], [0], [0], [1], [0, 0, 1, 1], [], []>} : vector<64x64xf32>, vector<64x128xf32>, vector<64x128xf32> -> vector<64x128xf32>
    %16 = vector.broadcast %14 : vector<64x1xf32> to vector<64x128xf32>
    %17 = arith.addf %15, %16 : vector<64x128xf32>
    %cst_9 = arith.constant 0.000000e+00 : f32
    %18 = vector.broadcast %cst_9 : f32 to vector<64x128xf32>
    %19 = arith.maximumf %17, %18 : vector<64x128xf32>
    %c0_10 = arith.constant 0 : index
    %c0_11 = arith.constant 0 : index
    %20 = vector.load %arg6[%c0_10, %c0_11] : memref<64x1xf32, #tpu.memory_space<vmem>>, vector<64x1xf32>
    %c0_12 = arith.constant 0 : index
    %c0_13 = arith.constant 0 : index
    %21 = vector.load %arg7[%c0_12, %c0_13] : memref<1x1xf32, #tpu.memory_space<vmem>>, vector<1x1xf32>
    %22 = vector.broadcast %20 : vector<64x1xf32> to vector<64x128xf32>
    %23 = arith.mulf %22, %19 : vector<64x128xf32>
    %cst_14 = arith.constant dense<0.000000e+00> : vector<128xf32>
    %24 = vector.multi_reduction <add>, %23, %cst_14 [0] : vector<64x128xf32> to vector<128xf32>
    %25 = vector.shape_cast %24 : vector<128xf32> to vector<1x128xf32>
    %26 = vector.broadcast %21 : vector<1x1xf32> to vector<1x128xf32>
    %27 = arith.addf %25, %26 : vector<1x128xf32>
    %c0_15 = arith.constant 0 : index
    %28 = arith.index_cast %1 : i32 to index
    %29 = vector.load %arg8[%c0_15, %28] : memref<1x128xf32, #tpu.memory_space<vmem>>, vector<1x128xf32>
    tpu.vector_store %arg8[%c0_15, %28], %27 {strides = array<i32>} : memref<1x128xf32, #tpu.memory_space<vmem>>, vector<1x128xf32>,
    %c1_i32 = arith.constant 1 : i32
    return
  }
  func.func @transform_0(%arg0: i32) -> (i32, i32) {
    %c0_i32 = arith.constant 0 : i32
    %c0_i32_0 = arith.constant 0 : i32
    return %c0_i32, %arg0 : i32, i32
  }
  func.func @transform_1(%arg0: i32) -> (i32, i32) {
    %c0_i32 = arith.constant 0 : i32
    %c0_i32_0 = arith.constant 0 : i32
    %c0_i32_1 = arith.constant 0 : i32
    return %c0_i32, %c0_i32_0 : i32, i32
  }
  func.func @transform_2(%arg0: i32) -> (i32, i32) {
    %c0_i32 = arith.constant 0 : i32
    %c0_i32_0 = arith.constant 0 : i32
    %c0_i32_1 = arith.constant 0 : i32
    return %c0_i32, %c0_i32_0 : i32, i32
  }
  func.func @transform_3(%arg0: i32) -> (i32, i32) {
    %c0_i32 = arith.constant 0 : i32
    %c0_i32_0 = arith.constant 0 : i32
    %c0_i32_1 = arith.constant 0 : i32
    return %c0_i32, %c0_i32_0 : i32, i32
  }
  func.func @transform_4(%arg0: i32) -> (i32, i32) {
    %c0_i32 = arith.constant 0 : i32
    %c0_i32_0 = arith.constant 0 : i32
    %c0_i32_1 = arith.constant 0 : i32
    return %c0_i32, %c0_i32_0 : i32, i32
  }
  func.func @transform_5(%arg0: i32) -> (i32, i32) {
    %c0_i32 = arith.constant 0 : i32
    %c0_i32_0 = arith.constant 0 : i32
    %c0_i32_1 = arith.constant 0 : i32
    return %c0_i32, %c0_i32_0 : i32, i32
  }
  func.func @transform_6(%arg0: i32) -> (i32, i32) {
    %c0_i32 = arith.constant 0 : i32
    %c0_i32_0 = arith.constant 0 : i32
    %c0_i32_1 = arith.constant 0 : i32
    return %c0_i32, %c0_i32_0 : i32, i32
  }
  func.func @transform_7(%arg0: i32) -> (i32, i32) {
    %c0_i32 = arith.constant 0 : i32
    %c0_i32_0 = arith.constant 0 : i32
    return %c0_i32, %arg0 : i32, i32
  }
}

</mosaic_0001>

<llo_original>
// kernel: critic_forward.1
$region0: #{critic_forward.1}
  #allocation0 [shape = 'u32[]', space=smem, size = 0x4, offset = 0x4, fixed_abs, tag = 'smem constant byte address 0x4 - core index']
  #allocation1 [shape = 'u32[144,128]{1,0:T(1,128)}', space=vmem, size = 0x12000, scoped, tag = 'internal scratch']
  #allocation2 [shape = 'f32[1,1]{1,0:T(1,128)S(1)}', space=vmem, size = 0x200, scoped, tag = 'scoped memory for critic_forward.1']
  %s0 = inlined_call_operand.vmem [shape: f32[1,256], index: 0, kind: input, shape index: {}]
  %s1 = inlined_call_operand.vmem [shape: f32[64,1], index: 1, kind: input, shape index: {}]
  %s2 = inlined_call_operand.vmem [shape: f32[64,1], index: 2, kind: input, shape index: {}]
  %s3 = inlined_call_operand.vmem [shape: f32[64,64], index: 3, kind: input, shape index: {}]
  %s4 = inlined_call_operand.vmem [shape: f32[64,1], index: 4, kind: input, shape index: {}]
  %s5 = inlined_call_operand.vmem [shape: f32[64,1], index: 5, kind: input, shape index: {}]
  %s6 = inlined_call_operand.<no memory space> [shape: f32[1,1], index: 6, kind: input, shape index: {}]
  %s7 = inlined_call_operand.vmem [shape: f32[1,256], index: 7, kind: output, shape index: {}]
  %s8 = sld [smem:[#allocation0]]
  $region61: #{critic_forward.1} parent=0
    _
  %s10 = ssub.s32 1, %s8
  %s11 = scalar_select 0, %s10, %s8
  %v12 = vstv %s6
  %13 = vst [vmem:[#allocation2] sm:$0x1] %v12
  loop: start=0, step=1, limit=4
  $region2: #{critic_forward.1} parent=0 // loop_pre_header
    _
  $region3: #{critic_forward.1} parent=0 // loop_header
    %s15 = sphi 0, %s19
    %p16 = scmp.ge.s32.totalorder %s15, 4
    %s25 = sphi 0, %s27
    %s28 = sphi 0, %s25
    %s29 = sphi 0, %s28
    %s45 = sphi 0, %s29
    %s49 = sphi 0, %s49
    %s51 = sphi 0, %s49
    %s52 = sphi 0, %s51
    %s66 = sphi 0, %s52
    %s70 = sphi 0, %s70
    %s72 = sphi 0, %s70
    %s73 = sphi 0, %s72
    %s87 = sphi 0, %s73
    %s91 = sphi 0, %s91
    %s93 = sphi 0, %s91
    %s94 = sphi 0, %s93
    %s108 = sphi 0, %s94
    %s112 = sphi 0, %s112
    %s114 = sphi 0, %s112
    %s115 = sphi 0, %s114
    %s129 = sphi 0, %s115
    %s133 = sphi 0, %s133
    %s135 = sphi 0, %s133
    %s136 = sphi 0, %s135
    %s150 = sphi 0, %s136
    %s154 = sphi 0, %s154
    %s156 = sphi 0, %s154
    %s157 = sphi 0, %s156
    %s171 = sphi 0, %s157
    %s177 = sphi 0, %s179
    %s180 = sphi 0, %s177
    %s181 = sphi 0, %s180
    %s197 = sphi 0, %s181
  $region4: #{critic_forward.1} parent=0 // loop_header_branch
    %18 = sbr.rel (%p16) target = $region8
  $region5: #{critic_forward.1} parent=0 // loop_body
    %s20 = ssub.s32 %s15, 1
    %s21 = ssub.s32 %s15, 2
    %s22 = sadd.s32 %s15, 1
    %s23 = ssub.s32 %s15, %s22
    %p24 = scmp.eq.s32.totalorder %s23, 0
    %s26 = sadd.s32 %s25, 1
    %s27 = scalar_select %p24, %s25, %s26
    %p30 = pneg %p24
    %p31 = scmp.eq.s32.totalorder %s15, 1
    %p32 = por %p30, %p31
    %p33 = scmp.ne.s32.totalorder %s25, %s28
    %p34 = scmp.eq.s32.totalorder %s15, 0
    %p35 = por %p33, %p34
    %p36 = scmp.ne.s32.totalorder %s25, %s28
    %p37 = scmp.eq.s32.totalorder %s20, 1
    %p38 = por %p36, %p37
    %p39 = scmp.ne.s32.totalorder %s28, %s29
    %p40 = scmp.eq.s32.totalorder %s20, 0
    %p41 = por %p39, %p40
    %p42 = scmp.ne.s32.totalorder %s28, %s29
    %p43 = scmp.eq.s32.totalorder %s21, 1
    %p44 = por %p42, %p43
    %p46 = scmp.ne.s32.totalorder %s29, %s45
    %p47 = scmp.eq.s32.totalorder %s21, 0
    %p48 = por %p46, %p47
    %s50 = sadd.s32 %s49, 1
    %p53 = scmp.eq.s32.totalorder %s15, 1
    %p54 = scmp.ne.s32.totalorder %s49, %s51
    %p55 = scmp.eq.s32.totalorder %s15, 0
    %p56 = por %p54, %p55
    %p57 = scmp.ne.s32.totalorder %s49, %s51
    %p58 = scmp.eq.s32.totalorder %s20, 1
    %p59 = por %p57, %p58
    %p60 = scmp.ne.s32.totalorder %s51, %s52
    %p61 = scmp.eq.s32.totalorder %s20, 0
    %p62 = por %p60, %p61
    %p63 = scmp.ne.s32.totalorder %s51, %s52
    %p64 = scmp.eq.s32.totalorder %s21, 1
    %p65 = por %p63, %p64
    %p67 = scmp.ne.s32.totalorder %s52, %s66
    %p68 = scmp.eq.s32.totalorder %s21, 0
    %p69 = por %p67, %p68
    %s71 = sadd.s32 %s70, 1
    %p74 = scmp.eq.s32.totalorder %s15, 1
    %p75 = scmp.ne.s32.totalorder %s70, %s72
    %p76 = scmp.eq.s32.totalorder %s15, 0
    %p77 = por %p75, %p76
    %p78 = scmp.ne.s32.totalorder %s70, %s72
    %p79 = scmp.eq.s32.totalorder %s20, 1
    %p80 = por %p78, %p79
    %p81 = scmp.ne.s32.totalorder %s72, %s73
    %p82 = scmp.eq.s32.totalorder %s20, 0
    %p83 = por %p81, %p82
    %p84 = scmp.ne.s32.totalorder %s72, %s73
    %p85 = scmp.eq.s32.totalorder %s21, 1
    %p86 = por %p84, %p85
    %p88 = scmp.ne.s32.totalorder %s73, %s87
    %p89 = scmp.eq.s32.totalorder %s21, 0
    %p90 = por %p88, %p89
    %s92 = sadd.s32 %s91, 1
    %p95 = scmp.eq.s32.totalorder %s15, 1
    %p96 = scmp.ne.s32.totalorder %s91, %s93
    %p97 = scmp.eq.s32.totalorder %s15, 0
    %p98 = por %p96, %p97
    %p99 = scmp.ne.s32.totalorder %s91, %s93
    %p100 = scmp.eq.s32.totalorder %s20, 1
    %p101 = por %p99, %p100
    %p102 = scmp.ne.s32.totalorder %s93, %s94
    %p103 = scmp.eq.s32.totalorder %s20, 0
    %p104 = por %p102, %p103
    %p105 = scmp.ne.s32.totalorder %s93, %s94
    %p106 = scmp.eq.s32.totalorder %s21, 1
    %p107 = por %p105, %p106
    %p109 = scmp.ne.s32.totalorder %s94, %s108
    %p110 = scmp.eq.s32.totalorder %s21, 0
    %p111 = por %p109, %p110
    %s113 = sadd.s32 %s112, 1
    %p116 = scmp.eq.s32.totalorder %s15, 1
    %p117 = scmp.ne.s32.totalorder %s112, %s114
    %p118 = scmp.eq.s32.totalorder %s15, 0
    %p119 = por %p117, %p118
    %p120 = scmp.ne.s32.totalorder %s112, %s114
    %p121 = scmp.eq.s32.totalorder %s20, 1
    %p122 = por %p120, %p121
    %p123 = scmp.ne.s32.totalorder %s114, %s115
    %p124 = scmp.eq.s32.totalorder %s20, 0
    %p125 = por %p123, %p124
    %p126 = scmp.ne.s32.totalorder %s114, %s115
    %p127 = scmp.eq.s32.totalorder %s21, 1
    %p128 = por %p126, %p127
    %p130 = scmp.ne.s32.totalorder %s115, %s129
    %p131 = scmp.eq.s32.totalorder %s21, 0
    %p132 = por %p130, %p131
    %s134 = sadd.s32 %s133, 1
    %p137 = scmp.eq.s32.totalorder %s15, 1
    %p138 = scmp.ne.s32.totalorder %s133, %s135
    %p139 = scmp.eq.s32.totalorder %s15, 0
    %p140 = por %p138, %p139
    %p141 = scmp.ne.s32.totalorder %s133, %s135
    %p142 = scmp.eq.s32.totalorder %s20, 1
    %p143 = por %p141, %p142
    %p144 = scmp.ne.s32.totalorder %s135, %s136
    %p145 = scmp.eq.s32.totalorder %s20, 0
    %p146 = por %p144, %p145
    %p147 = scmp.ne.s32.totalorder %s135, %s136
    %p148 = scmp.eq.s32.totalorder %s21, 1
    %p149 = por %p147, %p148
    %p151 = scmp.ne.s32.totalorder %s136, %s150
    %p152 = scmp.eq.s32.totalorder %s21, 0
    %p153 = por %p151, %p152
    %s155 = sadd.s32 %s154, 1
    %p158 = scmp.eq.s32.totalorder %s15, 1
    %p159 = scmp.ne.s32.totalorder %s154, %s156
    %p160 = scmp.eq.s32.totalorder %s15, 0
    %p161 = por %p159, %p160
    %p162 = scmp.ne.s32.totalorder %s154, %s156
    %p163 = scmp.eq.s32.totalorder %s20, 1
    %p164 = por %p162, %p163
    %p165 = scmp.ne.s32.totalorder %s156, %s157
    %p166 = scmp.eq.s32.totalorder %s20, 0
    %p167 = por %p165, %p166
    %p168 = scmp.ne.s32.totalorder %s156, %s157
    %p169 = scmp.eq.s32.totalorder %s21, 1
    %p170 = por %p168, %p169
    %p172 = scmp.ne.s32.totalorder %s157, %s171
    %p173 = scmp.eq.s32.totalorder %s21, 0
    %p174 = por %p172, %p173
    %s175 = ssub.s32 %s15, %s22
    %p176 = scmp.eq.s32.totalorder %s175, 0
    %s178 = sadd.s32 %s177, 1
    %s179 = scalar_select %p176, %s177, %s178
    %p182 = pneg %p176
    %p183 = scmp.eq.s32.totalorder %s15, 1
    %p184 = por %p182, %p183
    %p185 = scmp.ne.s32.totalorder %s177, %s180
    %p186 = scmp.eq.s32.totalorder %s15, 0
    %p187 = por %p185, %p186
    %p188 = scmp.ne.s32.totalorder %s177, %s180
    %p189 = scmp.eq.s32.totalorder %s20, 1
    %p190 = por %p188, %p189
    %p191 = scmp.ne.s32.totalorder %s180, %s181
    %p192 = scmp.eq.s32.totalorder %s20, 0
    %p193 = por %p191, %p192
    %p194 = scmp.ne.s32.totalorder %s180, %s181
    %p195 = scmp.eq.s32.totalorder %s21, 1
    %p196 = por %p194, %p195
    %p198 = scmp.ne.s32.totalorder %s181, %s197
    %p199 = scmp.eq.s32.totalorder %s21, 0
    %p200 = por %p198, %p199
    %p201 = scmp.le.s32.totalorder 1, %s15
    %p202 = scmp.lt.s32.totalorder %s15, 3
    %p203 = pnand %p201, %p202
    %p204 = pneg %p203
    // Predicated region
    $region9: #{critic_forward.1} parent=5 // pred_check
      _
    $region10: #{critic_forward.1} parent=5 // pred_check_branch
      %206 = sbr.rel (%p203) target = $region12
    $region11: #{critic_forward.1} parent=5 // pred_region
      %s207 = ssub.s32 %s15, 1
      // Predicated region
      $region13: #{critic_forward.1} parent=11 // pred_check
        %p208 = pneg %p62
      $region14: #{critic_forward.1} parent=11 // pred_check_branch
        %210 = sbr.rel (%p208) target = $region16
      $region15: #{critic_forward.1} parent=11 // pred_region
        _
      $region16: #{critic_forward.1} parent=11 // pred_fallthru
        _
      // Predicated region
      $region17: #{critic_forward.1} parent=11 // pred_check
        %p211 = pneg %p83
      $region18: #{critic_forward.1} parent=11 // pred_check_branch
        %213 = sbr.rel (%p211) target = $region20
      $region19: #{critic_forward.1} parent=11 // pred_region
        _
      $region20: #{critic_forward.1} parent=11 // pred_fallthru
        _
      // Predicated region
      $region21: #{critic_forward.1} parent=11 // pred_check
        %p214 = pneg %p104
      $region22: #{critic_forward.1} parent=11 // pred_check_branch
        %216 = sbr.rel (%p214) target = $region24
      $region23: #{critic_forward.1} parent=11 // pred_region
        _
      $region24: #{critic_forward.1} parent=11 // pred_fallthru
        _
      // Predicated region
      $region25: #{critic_forward.1} parent=11 // pred_check
        %p217 = pneg %p125
      $region26: #{critic_forward.1} parent=11 // pred_check_branch
        %219 = sbr.rel (%p217) target = $region28
      $region27: #{critic_forward.1} parent=11 // pred_region
        _
      $region28: #{critic_forward.1} parent=11 // pred_fallthru
        _
      // Predicated region
      $region29: #{critic_forward.1} parent=11 // pred_check
        %p220 = pneg %p146
      $region30: #{critic_forward.1} parent=11 // pred_check_branch
        %222 = sbr.rel (%p220) target = $region32
      $region31: #{critic_forward.1} parent=11 // pred_region
        _
      $region32: #{critic_forward.1} parent=11 // pred_fallthru
        _
      // Predicated region
      $region33: #{critic_forward.1} parent=11 // pred_check
        %p223 = pneg %p167
      $region34: #{critic_forward.1} parent=11 // pred_check_branch
        %225 = sbr.rel (%p223) target = $region36
      $region35: #{critic_forward.1} parent=11 // pred_region
        _
      $region36: #{critic_forward.1} parent=11 // pred_fallthru
        _
    $region12: #{critic_forward.1} parent=5 // pred_fallthru
      _
    %p226 = scmp.lt.s32.totalorder %s15, 2
    // Predicated region
    $region37: #{critic_forward.1} parent=5 // pred_check
      %p227 = pneg %p226
    $region38: #{critic_forward.1} parent=5 // pred_check_branch
      %229 = sbr.rel (%p227) target = $region40
    $region39: #{critic_forward.1} parent=5 // pred_region
      // Predicated region
      $region41: #{critic_forward.1} parent=39 // pred_check
        %p230 = pneg %p35
      $region42: #{critic_forward.1} parent=39 // pred_check_branch
        %232 = sbr.rel (%p230) target = $region44
      $region43: #{critic_forward.1} parent=39 // pred_region
        %p233 = scmp.lt.s32.totalorder %s15, 1
        %s234 = scalar_select %p233, %s15, 1
        %s235 = scalar_lea.vmem %s0, %s234
      $region44: #{critic_forward.1} parent=39 // pred_fallthru
        _
    $region40: #{critic_forward.1} parent=5 // pred_fallthru
      _
    %p236 = scmp.le.s32.totalorder 1, %s15
    %p237 = scmp.lt.s32.totalorder %s15, 3
    %p238 = pnand %p236, %p237
    %p239 = pneg %p238
    // Predicated region
    $region45: #{critic_forward.1} parent=5 // pred_check
      _
    $region46: #{critic_forward.1} parent=5 // pred_check_branch
      %241 = sbr.rel (%p238) target = $region48
    $region47: #{critic_forward.1} parent=5 // pred_region
      %s242 = ssub.s32 %s15, 1
      %p243 = scmp.lt.s32.totalorder %s20, 1
      %s244 = scalar_select %p243, %s20, 1
      %s245 = scalar_lea.vmem %s0, %s244
      %p246 = pneg %p41
      %p247 = pneg %p38
      %p248 = pneg %p62
      %p249 = pneg %p59
      %p250 = pneg %p83
      %p251 = pneg %p80
      %p252 = pneg %p104
      %p253 = pneg %p101
      %p254 = pneg %p125
      %p255 = pneg %p122
      %p256 = pneg %p146
      %p257 = pneg %p143
      %p258 = pneg %p167
      %p259 = pneg %p164
      %p260 = pneg %p193
      %p261 = pneg %p190
      %p262 = scmp.lt.s32.totalorder %s20, 1
      %s263 = scalar_select %p262, %s20, 1
      %s264 = scalar_lea.vmem %s7, %s263
      %p265 = scmp.lt.s32.totalorder %s20, 1
      %s266 = scalar_select %p265, %s20, 1
      %s267 = scalar_lea.vmem %s0, %s266
      %p268 = scmp.lt.s32.totalorder %s20, 1
      %s269 = scalar_select %p268, %s20, 1
      %s270 = scalar_lea.vmem %s7, %s269
      %v271 = vld [vmem:[%s267] sm:$0x1]
      %v272 = vld [vmem:[%s1] sm:$0xff]
      %v273 = vld [vmem:[%s1 + $0x8] sm:$0xff]
      %v274 = vld [vmem:[%s1 + $0x10] sm:$0xff]
      %v275 = vld [vmem:[%s1 + $0x18] sm:$0xff]
      %v276 = vld [vmem:[%s1 + $0x20] sm:$0xff]
      %v277 = vld [vmem:[%s1 + $0x28] sm:$0xff]
      %v278 = vld [vmem:[%s1 + $0x30] sm:$0xff]
      %v279 = vld [vmem:[%s1 + $0x38] sm:$0xff]
      %v280 = vld [vmem:[%s2] sm:$0xff]
      %v281 = vld [vmem:[%s2 + $0x8] sm:$0xff]
      %v282 = vld [vmem:[%s2 + $0x10] sm:$0xff]
      %v283 = vld [vmem:[%s2 + $0x18] sm:$0xff]
      %v284 = vld [vmem:[%s2 + $0x20] sm:$0xff]
      %v285 = vld [vmem:[%s2 + $0x28] sm:$0xff]
      %v286 = vld [vmem:[%s2 + $0x30] sm:$0xff]
      %v287 = vld [vmem:[%s2 + $0x38] sm:$0xff]
      %289 = vset.pattern.permute.xlu0 0
      %290 = vperm.xlu0 %289, %v272
      %v291 = vpop.permute.xlu0 %290
      %294 = vset.pattern.permute.xlu0 0
      %295 = vperm.xlu0 %294, %v273
      %v296 = vpop.permute.xlu0 %295
      %299 = vset.pattern.permute.xlu0 0
      %300 = vperm.xlu0 %299, %v274
      %v301 = vpop.permute.xlu0 %300
      %304 = vset.pattern.permute.xlu0 0
      %305 = vperm.xlu0 %304, %v275
      %v306 = vpop.permute.xlu0 %305
      %309 = vset.pattern.permute.xlu0 0
      %310 = vperm.xlu0 %309, %v276
      %v311 = vpop.permute.xlu0 %310
      %314 = vset.pattern.permute.xlu0 0
      %315 = vperm.xlu0 %314, %v277
      %v316 = vpop.permute.xlu0 %315
      %319 = vset.pattern.permute.xlu0 0
      %320 = vperm.xlu0 %319, %v278
      %v321 = vpop.permute.xlu0 %320
      %324 = vset.pattern.permute.xlu0 0
      %325 = vperm.xlu0 %324, %v279
      %v326 = vpop.permute.xlu0 %325
      %v329 = vlaneseq
      %v330 = vshrl.u32 %v329, 7
      %v331 = vsub.s32 0, %v330
      %v332 = vrot.slane %v271, %v331
      %v334 = vmul.f32 %v291, %v332
      %v335 = vmul.f32 %v296, %v332
      %v336 = vmul.f32 %v301, %v332
      %v337 = vmul.f32 %v306, %v332
      %v338 = vmul.f32 %v311, %v332
      %v339 = vmul.f32 %v316, %v332
      %v340 = vmul.f32 %v321, %v332
      %v341 = vmul.f32 %v326, %v332
      %343 = vset.pattern.permute.xlu0 0
      %344 = vperm.xlu0 %343, %v280
      %v345 = vpop.permute.xlu0 %344
      %348 = vset.pattern.permute.xlu0 0
      %349 = vperm.xlu0 %348, %v281
      %v350 = vpop.permute.xlu0 %349
      %353 = vset.pattern.permute.xlu0 0
      %354 = vperm.xlu0 %353, %v282
      %v355 = vpop.permute.xlu0 %354
      %358 = vset.pattern.permute.xlu0 0
      %359 = vperm.xlu0 %358, %v283
      %v360 = vpop.permute.xlu0 %359
      %363 = vset.pattern.permute.xlu0 0
      %364 = vperm.xlu0 %363, %v284
      %v365 = vpop.permute.xlu0 %364
      %368 = vset.pattern.permute.xlu0 0
      %369 = vperm.xlu0 %368, %v285
      %v370 = vpop.permute.xlu0 %369
      %373 = vset.pattern.permute.xlu0 0
      %374 = vperm.xlu0 %373, %v286
      %v375 = vpop.permute.xlu0 %374
      %378 = vset.pattern.permute.xlu0 0
      %379 = vperm.xlu0 %378, %v287
      %v380 = vpop.permute.xlu0 %379
      %v382 = vadd.f32 %v334, %v345
      %v383 = vadd.f32 %v335, %v350
      %v384 = vadd.f32 %v336, %v355
      %v385 = vadd.f32 %v337, %v360
      %v386 = vadd.f32 %v338, %v365
      %v387 = vadd.f32 %v339, %v370
      %v388 = vadd.f32 %v340, %v375
      %v389 = vadd.f32 %v341, %v380
      %v390 = vmax.f32 %v382, 0.0
      %v391 = vmax.f32 %v383, 0.0
      %v392 = vmax.f32 %v384, 0.0
      %v393 = vmax.f32 %v385, 0.0
      %v394 = vmax.f32 %v386, 0.0
      %v395 = vmax.f32 %v387, 0.0
      %v396 = vmax.f32 %v388, 0.0
      %v397 = vmax.f32 %v389, 0.0
      %v398 = vld [vmem:[%s3] sm:$0xff]
      %v399 = vld [vmem:[%s3 + $0x8] sm:$0xff]
      %v400 = vld [vmem:[%s3 + $0x10] sm:$0xff]
      %v401 = vld [vmem:[%s3 + $0x18] sm:$0xff]
      %v402 = vld [vmem:[%s3 + $0x20] sm:$0xff]
      %v403 = vld [vmem:[%s3 + $0x28] sm:$0xff]
      %v404 = vld [vmem:[%s3 + $0x30] sm:$0xff]
      %v405 = vld [vmem:[%s3 + $0x38] sm:$0xff]
      %v406 = vld [vmem:[%s4] sm:$0xff]
      %v407 = vld [vmem:[%s4 + $0x8] sm:$0xff]
      %v408 = vld [vmem:[%s4 + $0x10] sm:$0xff]
      %v409 = vld [vmem:[%s4 + $0x18] sm:$0xff]
      %v410 = vld [vmem:[%s4 + $0x20] sm:$0xff]
      %v411 = vld [vmem:[%s4 + $0x28] sm:$0xff]
      %v412 = vld [vmem:[%s4 + $0x30] sm:$0xff]
      %v413 = vld [vmem:[%s4 + $0x38] sm:$0xff]
      %415 = vset.pattern.permute.xlu0 0
      %416 = vperm.xlu0 %415, %v406
      %v417 = vpop.permute.xlu0 %416
      %420 = vset.pattern.permute.xlu0 0
      %421 = vperm.xlu0 %420, %v407
      %v422 = vpop.permute.xlu0 %421
      %425 = vset.pattern.permute.xlu0 0
      %426 = vperm.xlu0 %425, %v408
      %v427 = vpop.permute.xlu0 %426
      %430 = vset.pattern.permute.xlu0 0
      %431 = vperm.xlu0 %430, %v409
      %v432 = vpop.permute.xlu0 %431
      %435 = vset.pattern.permute.xlu0 0
      %436 = vperm.xlu0 %435, %v410
      %v437 = vpop.permute.xlu0 %436
      %440 = vset.pattern.permute.xlu0 0
      %441 = vperm.xlu0 %440, %v411
      %v442 = vpop.permute.xlu0 %441
      %445 = vset.pattern.permute.xlu0 0
      %446 = vperm.xlu0 %445, %v412
      %v447 = vpop.permute.xlu0 %446
      %450 = vset.pattern.permute.xlu0 0
      %451 = vperm.xlu0 %450, %v413
      %v452 = vpop.permute.xlu0 %451
      %vm454 = vcmask 523264
      %v456 = vsel %vm454, %v398, 0
      %v459 = vsel %vm454, %v399, 0
      %v462 = vsel %vm454, %v400, 0
      %v465 = vsel %vm454, %v401, 0
      %v468 = vsel %vm454, %v402, 0
      %v471 = vsel %vm454, %v403, 0
      %v474 = vsel %vm454, %v404, 0
      %v477 = vsel %vm454, %v405, 0
      %479 = vmatprep.subr.mxu0 0.0
      %480 = vmatpush1.msra.mxu0 %v390
      %481 = vmatprep.subr.mxu0 0.0
      %482 = vmatpush1.msra.mxu0 %v391
      %483 = vmatprep.subr.mxu0 0.0
      %484 = vmatpush1.msra.mxu0 %v392
      %485 = vmatprep.subr.mxu0 0.0
      %486 = vmatpush1.msra.mxu0 %v393
      %487 = vmatprep.subr.mxu0 0.0
      %488 = vmatpush1.msra.mxu0 %v394
      %489 = vmatprep.subr.mxu0 0.0
      %490 = vmatpush1.msra.mxu0 %v395
      %491 = vmatprep.subr.mxu0 0.0
      %492 = vmatpush1.msra.mxu0 %v396
      %493 = vmatprep.subr.mxu0 0.0
      %494 = vmatpush1.msra.mxu0 %v397
      %495 = vmatprep.subr.mxu0 0.0
      %496 = vmatpush1.msra.mxu0 0.0
      %497 = vmatprep.subr.mxu0 0.0
      %498 = vmatpush1.msra.mxu0 0.0
      %499 = vmatprep.subr.mxu0 0.0
      %500 = vmatpush1.msra.mxu0 0.0
      %501 = vmatprep.subr.mxu0 0.0
      %502 = vmatpush1.msra.mxu0 0.0
      %503 = vmatprep.subr.mxu0 0.0
      %504 = vmatpush1.msra.mxu0 0.0
      %505 = vmatprep.subr.mxu0 0.0
      %506 = vmatpush1.msra.mxu0 0.0
      %507 = vmatprep.subr.mxu0 0.0
      %508 = vmatpush1.msra.mxu0 0.0
      %509 = vmatprep.subr.mxu0 0.0
      %510 = vmatpush1.msra.mxu0 0.0
      %511 = vmatprep.subr.mxu0 0.0
      %512 = vmatpush1.msra.mxu0 0.0
      %513 = vmatprep.subr.mxu0 0.0
      %514 = vmatpush1.msra.mxu0 0.0
      %515 = vmatprep.subr.mxu0 0.0
      %516 = vmatpush1.msra.mxu0 0.0
      %517 = vmatprep.subr.mxu0 0.0
      %518 = vmatpush1.msra.mxu0 0.0
      %519 = vmatprep.subr.mxu0 0.0
      %520 = vmatpush1.msra.mxu0 0.0
      %521 = vmatprep.subr.mxu0 0.0
      %522 = vmatpush1.msra.mxu0 0.0
      %523 = vmatprep.subr.mxu0 0.0
      %524 = vmatpush1.msra.mxu0 0.0
      %525 = vmatprep.subr.mxu0 0.0
      %526 = vmatpush1.msra.mxu0 0.0
      %527 = vmatprep.subr.mxu0 0.0
      %528 = vmatpush1.msra.mxu0 0.0
      %529 = vmatprep.subr.mxu0 0.0
      %530 = vmatpush1.msra.mxu0 0.0
      %531 = vmatprep.subr.mxu0 0.0
      %532 = vmatpush1.msra.mxu0 0.0
      %533 = vmatprep.subr.mxu0 0.0
      %534 = vmatpush1.msra.mxu0 0.0
      %535 = vmatprep.subr.mxu0 0.0
      %536 = vmatpush1.msra.mxu0 0.0
      %537 = vmatprep.subr.mxu0 0.0
      %538 = vmatpush1.msra.mxu0 0.0
      %539 = vmatprep.subr.mxu0 0.0
      %540 = vmatpush1.msra.mxu0 0.0
      %541 = vmatprep.subr.mxu0 0.0
      %542 = vmatpush1.msra.mxu0 0.0
      %543 = vmatprep.mubr.f32.mxu0 0.0
      %544 = vmatmul.mubr.f32.gmra.mrb[0].mxu0 %v456
      %v545 = vpop.f32.mrb[0].mxu0
      %v546 = vadd.f32 %v417, %v545
      %v547 = vpop.f32.mrb[0].mxu0
      %548 = vmatprep.mubr.f32.mxu0 0.0
      %549 = vmatmul.mubr.f32.gmra.mrb[0].mxu0 %v459
      %v550 = vpop.f32.mrb[0].mxu0
      %v551 = vadd.f32 %v422, %v550
      %v552 = vpop.f32.mrb[0].mxu0
      %553 = vmatprep.mubr.f32.mxu0 0.0
      %554 = vmatmul.mubr.f32.gmra.mrb[0].mxu0 %v462
      %v555 = vpop.f32.mrb[0].mxu0
      %v556 = vadd.f32 %v427, %v555
      %v557 = vpop.f32.mrb[0].mxu0
      %558 = vmatprep.mubr.f32.mxu0 0.0
      %559 = vmatmul.mubr.f32.gmra.mrb[0].mxu0 %v465
      %v560 = vpop.f32.mrb[0].mxu0
      %v561 = vadd.f32 %v432, %v560
      %v562 = vpop.f32.mrb[0].mxu0
      %563 = vmatprep.mubr.f32.mxu0 0.0
      %564 = vmatmul.mubr.f32.gmra.mrb[0].mxu0 %v468
      %v565 = vpop.f32.mrb[0].mxu0
      %v566 = vadd.f32 %v437, %v565
      %v567 = vpop.f32.mrb[0].mxu0
      %568 = vmatprep.mubr.f32.mxu0 0.0
      %569 = vmatmul.mubr.f32.gmra.mrb[0].mxu0 %v471
      %v570 = vpop.f32.mrb[0].mxu0
      %v571 = vadd.f32 %v442, %v570
      %v572 = vpop.f32.mrb[0].mxu0
      %573 = vmatprep.mubr.f32.mxu0 0.0
      %574 = vmatmul.mubr.f32.gmra.mrb[0].mxu0 %v474
      %v575 = vpop.f32.mrb[0].mxu0
      %v576 = vadd.f32 %v447, %v575
      %v577 = vpop.f32.mrb[0].mxu0
      %578 = vmatprep.mubr.f32.mxu0 0.0
      %579 = vmatmul.mubr.f32.gmra.mrb[0].mxu0 %v477
      %v580 = vpop.f32.mrb[0].mxu0
      %v581 = vadd.f32 %v452, %v580
      %v582 = vpop.f32.mrb[0].mxu0
      %583 = vdwg.mxu0
      %v584 = vmax.f32 %v546, 0.0
      %v585 = vmax.f32 %v551, 0.0
      %v586 = vmax.f32 %v556, 0.0
      %v587 = vmax.f32 %v561, 0.0
      %v588 = vmax.f32 %v566, 0.0
      %v589 = vmax.f32 %v571, 0.0
      %v590 = vmax.f32 %v576, 0.0
      %v591 = vmax.f32 %v581, 0.0
      %v592 = vld [vmem:[%s5] sm:$0xff]
      %v593 = vld [vmem:[%s5 + $0x8] sm:$0xff]
      %v594 = vld [vmem:[%s5 + $0x10] sm:$0xff]
      %v595 = vld [vmem:[%s5 + $0x18] sm:$0xff]
      %v596 = vld [vmem:[%s5 + $0x20] sm:$0xff]
      %v597 = vld [vmem:[%s5 + $0x28] sm:$0xff]
      %v598 = vld [vmem:[%s5 + $0x30] sm:$0xff]
      %v599 = vld [vmem:[%s5 + $0x38] sm:$0xff]
      %v600 = vld [vmem:[#allocation2] sm:$0x1]
      %602 = vset.pattern.permute.xlu0 0
      %603 = vperm.xlu0 %602, %v592
      %v604 = vpop.permute.xlu0 %603
      %607 = vset.pattern.permute.xlu0 0
      %608 = vperm.xlu0 %607, %v593
      %v609 = vpop.permute.xlu0 %608
      %612 = vset.pattern.permute.xlu0 0
      %613 = vperm.xlu0 %612, %v594
      %v614 = vpop.permute.xlu0 %613
      %617 = vset.pattern.permute.xlu0 0
      %618 = vperm.xlu0 %617, %v595
      %v619 = vpop.permute.xlu0 %618
      %622 = vset.pattern.permute.xlu0 0
      %623 = vperm.xlu0 %622, %v596
      %v624 = vpop.permute.xlu0 %623
      %627 = vset.pattern.permute.xlu0 0
      %628 = vperm.xlu0 %627, %v597
      %v629 = vpop.permute.xlu0 %628
      %632 = vset.pattern.permute.xlu0 0
      %633 = vperm.xlu0 %632, %v598
      %v634 = vpop.permute.xlu0 %633
      %637 = vset.pattern.permute.xlu0 0
      %638 = vperm.xlu0 %637, %v599
      %v639 = vpop.permute.xlu0 %638
      %v641 = vmul.f32 %v604, %v584
      %v642 = vmul.f32 %v609, %v585
      %v643 = vmul.f32 %v614, %v586
      %v644 = vmul.f32 %v619, %v587
      %v645 = vmul.f32 %v624, %v588
      %v646 = vmul.f32 %v629, %v589
      %v647 = vmul.f32 %v634, %v590
      %v648 = vmul.f32 %v639, %v591
      %v649 = vadd.f32 %v641, %v642
      %v650 = vadd.f32 %v649, %v643
      %v651 = vadd.f32 %v650, %v644
      %v652 = vadd.f32 %v651, %v645
      %v653 = vadd.f32 %v652, %v646
      %v654 = vadd.f32 %v653, %v647
      %v655 = vadd.f32 %v654, %v648
      %v656 = vrot.slane %v655, 4
      %v657 = vadd.f32 %v655, %v656
      %v658 = vrot.slane %v657, 2
      %v659 = vadd.f32 %v657, %v658
      %v660 = vrot.slane %v659, 1
      %v661 = vadd.f32 %v659, %v660
      %663 = vset.pattern.permute.xlu0 0
      %664 = vperm.xlu0 %663, %v600
      %v665 = vpop.permute.xlu0 %664
      %v667 = vlaneseq
      %v668 = vshrl.u32 %v667, 7
      %v669 = vsub.s32 0, %v668
      %v670 = vrot.slane %v665, %v669
      %v671 = vadd.f32 %v661, %v670
      %672 = vst [vmem:[%s270] sm:$0x1] %v671
      %p673 = scmp.lt.s32.totalorder %s20, 1
      %s674 = scalar_select %p673, %s20, 1
      %s675 = scalar_lea.vmem %s7, %s674
      // Predicated region
      $region49: #{critic_forward.1} parent=47 // pred_check
        %p676 = pneg %p190
      $region50: #{critic_forward.1} parent=47 // pred_check_branch
        %678 = sbr.rel (%p676) target = $region52
      $region51: #{critic_forward.1} parent=47 // pred_region
        _
      $region52: #{critic_forward.1} parent=47 // pred_fallthru
        _
    $region48: #{critic_forward.1} parent=5 // pred_fallthru
      _
    %p679 = scmp.le.s32.totalorder 2, %s15
    // Predicated region
    $region53: #{critic_forward.1} parent=5 // pred_check
      %p680 = pneg %p679
    $region54: #{critic_forward.1} parent=5 // pred_check_branch
      %682 = sbr.rel (%p680) target = $region56
    $region55: #{critic_forward.1} parent=5 // pred_region
      %s683 = ssub.s32 %s15, 2
      // Predicated region
      $region57: #{critic_forward.1} parent=55 // pred_check
        %p684 = pneg %p196
      $region58: #{critic_forward.1} parent=55 // pred_check_branch
        %686 = sbr.rel (%p684) target = $region60
      $region59: #{critic_forward.1} parent=55 // pred_region
        %p687 = scmp.lt.s32.totalorder %s21, 1
        %s688 = scalar_select %p687, %s21, 1
        %s689 = scalar_lea.vmem %s7, %s688
      $region60: #{critic_forward.1} parent=55 // pred_fallthru
        _
    $region56: #{critic_forward.1} parent=5 // pred_fallthru
      _
  $region6: #{critic_forward.1} parent=0 // loop_footer
    %s19 = sadd.s32 1, %s15
  $region7: #{critic_forward.1} parent=0 // loop_footer_branch
    %14 = sbr.rel target = $region3
  $region8: #{critic_forward.1} parent=0 // loop_exit
    _

</llo_original>
